<compile_context>
chip_gen: v7x
topology: tpu7x:2x2x1
jax: 0.10.0
libtpu: 0.0.40
codegen_flags: <defaults>
</compile_context>

<pallas_src>
import math

import jax
import jax.numpy as jnp
from jax.experimental import pallas as pl
from jax.experimental.pallas import tpu as pltpu


def _round_up(x, m):
    return ((x + m - 1) // m) * m


def _cdiv(a, b):
    return (a + b - 1) // b


def _maybe_pad(x, pads):
    if all(lo == 0 and hi == 0 for lo, hi in pads):
        return x
    return jnp.pad(x, pads)


def _vmem_budget_bytes():
    """Generation-aware VMEM budget (~85% of per-core capacity).

    ~54 MiB on v7x (64 MiB parts), ~108 MiB on v5e/v6e (128 MiB parts).
    Falls back to a conservative 64 MiB * 0.85 if the query is unavailable.
    """
    try:
        cap = pltpu.get_tpu_info().vmem_capacity_bytes
    except Exception:
        cap = 64 * 1024 * 1024
    return int(cap * 0.85)


def _classification_head_kernel(x_ref, w1t_ref, b1_ref, w2t_ref, b2_ref,
                                o_ref, acc_ref):
    j = pl.program_id(1)

    @pl.when(j == 0)
    def _():
        acc_ref[...] = jnp.zeros_like(acc_ref)

    # Hidden slice j: relu(x @ W1^T[:, tile_j] + b1[tile_j]) — MXU in bf16,
    # f32 accumulation; bias add / ReLU on the VPU in f32.
    h = jnp.dot(x_ref[...], w1t_ref[...], preferred_element_type=jnp.float32)
    h = jnp.maximum(h + b1_ref[...], 0.0)

    # Second layer: accumulate over hidden tiles into the f32 scratch.
    acc_ref[...] += jnp.dot(h.astype(w2t_ref.dtype), w2t_ref[...],
                            preferred_element_type=jnp.float32)

    @pl.when(j == pl.num_programs(1) - 1)
    def _():
        o_ref[...] = (acc_ref[...] + b2_ref[...]).astype(o_ref.dtype)


def prepare_classification_head_params(w1, b1, w2, b2, *,
                                        compute_dtype=jnp.bfloat16):
    """One-time weight prep: transpose, lane-dense zero-pad, bf16 cast.

    PyTorch nn.Linear semantics: y = x @ W.T + b.
      w1: (d_ff, d_ff), b1: (d_ff,), w2: (target_window, d_ff), b2: (target_window,)
    """
    d_ff = w1.shape[1]
    n_out = w2.shape[0]
    d_ff_p = _round_up(d_ff, 128)
    n_out_p = _round_up(n_out, 128)

    w1t = _maybe_pad(w1.T, ((0, d_ff_p - d_ff), (0, d_ff_p - d_ff)))
    w2t = _maybe_pad(w2.T, ((0, d_ff_p - d_ff), (0, n_out_p - n_out)))
    b1p = _maybe_pad(b1, ((0, d_ff_p - d_ff),)).reshape(1, d_ff_p)
    b2p = _maybe_pad(b2, ((0, n_out_p - n_out),)).reshape(1, n_out_p)

    return dict(
        w1t=w1t.astype(compute_dtype),          # (d_ff_p, d_ff_p) bf16
        b1=b1p.astype(jnp.float32),             # (1, d_ff_p)      f32
        w2t=w2t.astype(compute_dtype),          # (d_ff_p, n_out_p) bf16
        b2=b2p.astype(jnp.float32),             # (1, n_out_p)     f32
        d_ff=d_ff,
        n_out=n_out,
    )


def _choose_tiles(rows_p, d_ff_p, n_out_p, budget, tm_req):
    """Pick (row tile tm, hidden tile th) from the generation VMEM budget."""
    # Hidden tile: largest divisor of d_ff_p (multiple of 128) whose
    # double-buffered bf16 weight tiles fit in ~40% of the budget.
    weight_budget = budget * 2 // 5
    n128 = d_ff_p // 128
    th = 128
    for k in range(1, n128 + 1):
        if n128 % k:
            continue
        cand = d_ff_p // k
        wbytes = 2 * 2 * (d_ff_p * cand + cand * n_out_p)   # bf16, 2 pipeline bufs
        if wbytes <= weight_budget:
            th = cand
            break

    weight_bytes = 2 * 2 * (d_ff_p * th + th * n_out_p) + 4 * (d_ff_p + n_out_p)
    # Per-row VMEM: bf16 x tile (double buffered) + f32 hidden temp +
    # f32 output tile (double buffered) + f32 accumulator scratch.
    per_row = 2 * 2 * d_ff_p + 4 * th + 2 * 4 * n_out_p + 4 * n_out_p
    tm = max(8, ((budget - weight_bytes) // per_row // 8) * 8)
    if tm_req is not None:
        tm = min(tm, max(8, (int(tm_req) // 8) * 8))   # round user tm down to x8
    tm = min(tm, 1024)
    # Keep >= 2 row-grid steps whenever possible so v7x can shard the
    # "parallel" row axis across its 2 TensorCores.
    if rows_p > 8:
        tm = min(tm, _round_up(_cdiv(rows_p, 2), 8))
    tm = min(tm, rows_p)
    return tm, th


def classification_head_prepared(x, params, *, tm=None):
    """Apply the prepared ClassificationHead to x of shape (..., d_ff)."""
    d_ff, n_out = params["d_ff"], params["n_out"]
    w1t, b1p, w2t, b2p = params["w1t"], params["b1"], params["w2t"], params["b2"]
    d_ff_p, n_out_p = w1t.shape[0], w2t.shape[1]
    compute_dtype = w1t.dtype

    lead_shape = x.shape[:-1]
    rows = math.prod(lead_shape) if lead_shape else 1
    rows_p = _round_up(max(rows, 1), 8)        # sublane-align only; no tile pad

    budget = _vmem_budget_bytes()
    tm_sel, th = _choose_tiles(rows_p, d_ff_p, n_out_p, budget, tm)
    grid = (_cdiv(rows_p, tm_sel), d_ff_p // th)

    x2d = x.reshape(rows, d_ff)
    x2d = _maybe_pad(x2d, ((0, rows_p - rows), (0, d_ff_p - d_ff)))
    x2d = x2d.astype(compute_dtype)

    wt_item = jnp.dtype(compute_dtype).itemsize
    out_item = jnp.dtype(x.dtype).itemsize
    flops = 2 * rows_p * d_ff_p * (d_ff_p + n_out_p)
    bytes_accessed = (
        rows_p * d_ff_p * wt_item
        + (d_ff_p * d_ff_p + d_ff_p * n_out_p) * wt_item
        + (d_ff_p + n_out_p) * 4
        + rows_p * n_out_p * out_item
    )

    out2d = pl.pallas_call(
        _classification_head_kernel,
        out_shape=jax.ShapeDtypeStruct((rows_p, n_out_p), x.dtype),
        grid=grid,
        in_specs=[
            pl.BlockSpec((tm_sel, d_ff_p), lambda i, j: (i, 0)),   # x (const over j)
            pl.BlockSpec((d_ff_p, th), lambda i, j: (0, j)),       # W1^T col tile
            pl.BlockSpec((1, th), lambda i, j: (0, j)),            # b1 tile
            pl.BlockSpec((th, n_out_p), lambda i, j: (j, 0)),      # W2^T row tile
            pl.BlockSpec((1, n_out_p), lambda i, j: (0, 0)),       # b2 resident
        ],
        out_specs=pl.BlockSpec((tm_sel, n_out_p), lambda i, j: (i, 0)),
        scratch_shapes=[pltpu.VMEM((tm_sel, n_out_p), jnp.float32)],
        compiler_params=pltpu.CompilerParams(
            dimension_semantics=("parallel", "arbitrary"),
            vmem_limit_bytes=budget,
        ),
        cost_estimate=pl.CostEstimate(
            flops=flops, transcendentals=0, bytes_accessed=bytes_accessed),
    )(x2d, w1t, b1p, w2t, b2p)

    out = out2d[:rows, :n_out]
    return out.reshape(*lead_shape, n_out)


def classification_head(x, w1, b1, w2, b2, *, tm=None):
    params = prepare_classification_head_params(w1, b1, w2, b2)
    return classification_head_prepared(x, params, tm=tm)


def _reference(x, w1, b1, w2, b2):
    h = jnp.maximum(jnp.einsum("...i,oi->...o", x, w1) + b1, 0.0)
    return jnp.einsum("...i,oi->...o", h, w2) + b2


if __name__ == "__main__":
    # Small shapes consistent with the module: d_ff hidden size, n_classes outputs.
    batch, seq, d_ff, target_window = 2, 8, 32, 4

    key = jax.random.PRNGKey(0)
    kx, kw1, kb1, kw2, kb2 = jax.random.split(key, 5)

    x = jax.random.normal(kx, (batch, seq, d_ff), dtype=jnp.float32)

    # Deterministic synthetic parameter init (nn.Linear(d_ff, d_ff) and
    # nn.Linear(d_ff, target_window) shapes; no checkpoint loading).
    bound1 = 1.0 / (d_ff ** 0.5)
    w1 = jax.random.uniform(kw1, (d_ff, d_ff), jnp.float32, -bound1, bound1)
    b1 = jax.random.uniform(kb1, (d_ff,), jnp.float32, -bound1, bound1)
    w2 = jax.random.uniform(kw2, (target_window, d_ff), jnp.float32, -bound1, bound1)
    b2 = jax.random.uniform(kb2, (target_window,), jnp.float32, -bound1, bound1)

    # One-time weight prep (transpose + pad + bf16 cast), then the kernel call.
    params = prepare_classification_head_params(w1, b1, w2, b2)
    out = classification_head_prepared(x, params)
    out = jax.block_until_ready(out)

    ref = _reference(x, w1, b1, w2, b2)
    assert out.shape == (batch, seq, target_window), out.shape
    # bf16 inputs/weights with f32 accumulation: ~1e-2-level tolerance vs f32 ref.
    assert jnp.allclose(out, ref, atol=5e-2, rtol=5e-2), \
        float(jnp.max(jnp.abs(out - ref)))

    print("KERNEL_OK")
</pallas_src>

<mosaic_0001>
module attributes {stable_mosaic.version = 11 : i64} {
  func.func @_classification_head_kernel(%arg0: i32, %arg1: i32, %arg2: memref<8x128xbf16, #tpu.memory_space<vmem>>, %arg3: memref<128x128xbf16, #tpu.memory_space<vmem>>, %arg4: memref<1x128xf32, #tpu.memory_space<vmem>>, %arg5: memref<128x128xbf16, #tpu.memory_space<vmem>>, %arg6: memref<1x128xf32, #tpu.memory_space<vmem>>, %arg7: memref<8x128xf32, #tpu.memory_space<vmem>>, %arg8: memref<8x128xf32, #tpu.memory_space<vmem>>) attributes {dimension_semantics = [#tpu.dimension_semantics<parallel>, #tpu.dimension_semantics<arbitrary>], iteration_bounds = array<i64: 2, 1>, scalar_prefetch = 0 : i64, scratch_operands = 1 : i64, tpu.core_type = #tpu.core_type<tc>, window_params = [{transform_indices = @transform_0, window_bounds = array<i64: 8, 128>}, {transform_indices = @transform_1, window_bounds = array<i64: 128, 128>}, {transform_indices = @transform_2, window_bounds = array<i64: 1, 128>}, {transform_indices = @transform_3, window_bounds = array<i64: 128, 128>}, {pipeline_mode = #tpu.pipeline_mode<synchronous>, transform_indices = @transform_4, window_bounds = array<i64: 1, 128>}, {transform_indices = @transform_5, window_bounds = array<i64: 8, 128>}]} {
    %c0_i32 = arith.constant 0 : i32
    %0 = arith.cmpi eq, %arg1, %c0_i32 : i32
    %1 = arith.extui %0 : i1 to i32
    %c0_i32_0 = arith.constant 0 : i32
    %2 = arith.cmpi ne, %1, %c0_i32_0 : i32
    scf.if %2 {
      %cst_16 = arith.constant 0.000000e+00 : f32
      %20 = vector.broadcast %cst_16 : f32 to vector<8x128xf32>
      %c0_17 = arith.constant 0 : index
      %c0_18 = arith.constant 0 : index
      %21 = vector.load %arg8[%c0_17, %c0_18] : memref<8x128xf32, #tpu.memory_space<vmem>>, vector<8x128xf32>
      tpu.vector_store %arg8[%c0_17, %c0_18], %20 {strides = array<i32>} : memref<8x128xf32, #tpu.memory_space<vmem>>, vector<8x128xf32>,
    } else {
    }
    %c0 = arith.constant 0 : index
    %c0_1 = arith.constant 0 : index
    %3 = vector.load %arg2[%c0, %c0_1] : memref<8x128xbf16, #tpu.memory_space<vmem>>, vector<8x128xbf16>
    %c0_2 = arith.constant 0 : index
    %c0_3 = arith.constant 0 : index
    %4 = vector.load %arg3[%c0_2, %c0_3] : memref<128x128xbf16, #tpu.memory_space<vmem>>, vector<128x128xbf16>
    %cst = arith.constant dense<0.000000e+00> : vector<8x128xf32>
    %5 = tpu.matmul %3, %4, %cst {dimension_numbers = #tpu.dot_dimension_numbers<[1], [0], [0], [1], [0, 0, 1, 1], [], []>} : vector<8x128xbf16>, vector<128x128xbf16>, vector<8x128xf32> -> vector<8x128xf32>
    %c0_4 = arith.constant 0 : index
    %c0_5 = arith.constant 0 : index
    %6 = vector.load %arg4[%c0_4, %c0_5] : memref<1x128xf32, #tpu.memory_space<vmem>>, vector<1x128xf32>
    %7 = vector.broadcast %6 : vector<1x128xf32> to vector<8x128xf32>
    %8 = arith.addf %5, %7 : vector<8x128xf32>
    %cst_6 = arith.constant 0.000000e+00 : f32
    %9 = vector.broadcast %cst_6 : f32 to vector<8x128xf32>
    %10 = arith.maximumf %8, %9 : vector<8x128xf32>
    %c0_7 = arith.constant 0 : index
    %c0_8 = arith.constant 0 : index
    %11 = vector.load %arg8[%c0_7, %c0_8] : memref<8x128xf32, #tpu.memory_space<vmem>>, vector<8x128xf32>
    %12 = arith.truncf %10 : vector<8x128xf32> to vector<8x128xbf16>
    %c0_9 = arith.constant 0 : index
    %c0_10 = arith.constant 0 : index
    %13 = vector.load %arg5[%c0_9, %c0_10] : memref<128x128xbf16, #tpu.memory_space<vmem>>, vector<128x128xbf16>
    %cst_11 = arith.constant dense<0.000000e+00> : vector<8x128xf32>
    %14 = tpu.matmul %12, %13, %cst_11 {dimension_numbers = #tpu.dot_dimension_numbers<[1], [0], [0], [1], [0, 0, 1, 1], [], []>} : vector<8x128xbf16>, vector<128x128xbf16>, vector<8x128xf32> -> vector<8x128xf32>
    %15 = arith.addf %11, %14 : vector<8x128xf32>
    %c0_12 = arith.constant 0 : index
    %c0_13 = arith.constant 0 : index
    %16 = vector.load %arg8[%c0_12, %c0_13] : memref<8x128xf32, #tpu.memory_space<vmem>>, vector<8x128xf32>
    tpu.vector_store %arg8[%c0_12, %c0_13], %15 {strides = array<i32>} : memref<8x128xf32, #tpu.memory_space<vmem>>, vector<8x128xf32>,
    %c0_i32_14 = arith.constant 0 : i32
    %17 = arith.cmpi eq, %arg1, %c0_i32_14 : i32
    %18 = arith.extui %17 : i1 to i32
    %c0_i32_15 = arith.constant 0 : i32
    %19 = arith.cmpi ne, %18, %c0_i32_15 : i32
    scf.if %19 {
      %c0_16 = arith.constant 0 : index
      %c0_17 = arith.constant 0 : index
      %20 = vector.load %arg8[%c0_16, %c0_17] : memref<8x128xf32, #tpu.memory_space<vmem>>, vector<8x128xf32>
      %c0_18 = arith.constant 0 : index
      %c0_19 = arith.constant 0 : index
      %21 = vector.load %arg6[%c0_18, %c0_19] : memref<1x128xf32, #tpu.memory_space<vmem>>, vector<1x128xf32>
      %22 = vector.broadcast %21 : vector<1x128xf32> to vector<8x128xf32>
      %23 = arith.addf %20, %22 : vector<8x128xf32>
      %c0_20 = arith.constant 0 : index
      %c0_21 = arith.constant 0 : index
      %24 = vector.load %arg7[%c0_20, %c0_21] : memref<8x128xf32, #tpu.memory_space<vmem>>, vector<8x128xf32>
      tpu.vector_store %arg7[%c0_20, %c0_21], %23 {strides = array<i32>} : memref<8x128xf32, #tpu.memory_space<vmem>>, vector<8x128xf32>,
    } else {
    }
    return
  }
  func.func @transform_0(%arg0: i32, %arg1: i32) -> (i32, i32) {
    %c0_i32 = arith.constant 0 : i32
    %c0_i32_0 = arith.constant 0 : i32
    return %arg0, %c0_i32 : i32, i32
  }
  func.func @transform_1(%arg0: i32, %arg1: i32) -> (i32, i32) {
    %c0_i32 = arith.constant 0 : i32
    %c0_i32_0 = arith.constant 0 : i32
    return %c0_i32, %arg1 : i32, i32
  }
  func.func @transform_2(%arg0: i32, %arg1: i32) -> (i32, i32) {
    %c0_i32 = arith.constant 0 : i32
    %c0_i32_0 = arith.constant 0 : i32
    return %c0_i32, %arg1 : i32, i32
  }
  func.func @transform_3(%arg0: i32, %arg1: i32) -> (i32, i32) {
    %c0_i32 = arith.constant 0 : i32
    %c0_i32_0 = arith.constant 0 : i32
    return %arg1, %c0_i32 : i32, i32
  }
  func.func @transform_4(%arg0: i32, %arg1: i32) -> (i32, i32) {
    %c0_i32 = arith.constant 0 : i32
    %c0_i32_0 = arith.constant 0 : i32
    %c0_i32_1 = arith.constant 0 : i32
    return %c0_i32, %c0_i32_0 : i32, i32
  }
  func.func @transform_5(%arg0: i32, %arg1: i32) -> (i32, i32) {
    %c0_i32 = arith.constant 0 : i32
    %c0_i32_0 = arith.constant 0 : i32
    return %arg0, %c0_i32 : i32, i32
  }
}

</mosaic_0001>

<llo_original>
// kernel: tpu_custom_call.1
$region0: #{tpu_custom_call.1}
  #allocation0 [shape = 'u32[]', space=smem, size = 0x4, offset = 0x4, fixed_abs, tag = 'smem constant byte address 0x4 - core index']
  #allocation1 [shape = 'u32[144,128]{1,0:T(1,128)}', space=vmem, size = 0x12000, scoped, tag = 'internal scratch']
  #allocation2 [shape = 'f32[8,128]{1,0:T(8,128)}', space=vmem, size = 0x1000, scoped, tag = 'scratch operand']
  %s0 = inlined_call_operand.hbm [shape: bf16[16,128], index: 0, kind: input, shape index: {}]
  %s1 = inlined_call_operand.hbm [shape: bf16[128,128], index: 1, kind: input, shape index: {}]
  %s2 = inlined_call_operand.vmem [shape: f32[1,128], index: 2, kind: input, shape index: {}]
  %s3 = inlined_call_operand.hbm [shape: bf16[128,128], index: 3, kind: input, shape index: {}]
  %s4 = inlined_call_operand.vmem [shape: f32[1,128], index: 4, kind: input, shape index: {}]
  %s5 = inlined_call_operand.hbm [shape: f32[16,128], index: 5, kind: output, shape index: {}]
  %s6 = sld [smem:[#allocation0]]
  $region73: #{tpu_custom_call.1} parent=0
    _
  %s8 = ssub.s32 1, %s6
  %s9 = scalar_select 0, %s8, %s6
  $region1: #{tpu_custom_call.1} parent=0
    #allocation3 [shape = 'u8[4096]{0}', space=vmem, size = 0x1000, scoped, tag = 'input window, operand 0']
    #allocation4 [shape = 's32[2]{0}', space=sflag, size = 0x8, scoped, tag = 'scoped memory for tpu_custom_call.1']
    #allocation5 [shape = 's32[2]{0}', space=sflag, size = 0x8, scoped, tag = 'scoped memory for tpu_custom_call.1']
    #allocation6 [shape = 'u8[32768]{0}', space=vmem, size = 0x8000, scoped, tag = 'input window, operand 1, single buffered']
    #allocation7 [shape = 's32[1]{0}', space=sflag, size = 0x4, scoped, tag = 'scoped memory for tpu_custom_call.1']
    #allocation8 [shape = 'u8[32768]{0}', space=vmem, size = 0x8000, scoped, tag = 'input window, operand 3, single buffered']
    #allocation9 [shape = 'u8[8192]{0}', space=vmem, size = 0x2000, scoped, tag = 'output window, operand 0']
    %10 = vsyncpa [#allocation4], 0
    %s11 = scalar_lea.sflag [#allocation4], 1
    %12 = vsyncpa %s11, 0
    %13 = vsyncpa [#allocation7], 0
    %14 = vsyncpa [#allocation5], 0
    %s15 = scalar_lea.sflag [#allocation5], 1
    %16 = vsyncpa %s15, 0
    loop: start=0, step=1, limit=4
    $region2: #{tpu_custom_call.1} parent=1 // loop_pre_header
      _
    $region3: #{tpu_custom_call.1} parent=1 // loop_header
      %s18 = sphi 0, %s22
      %p19 = scmp.ge.s32.totalorder %s18, 4
      %s25 = sphi 0, %s37
      %s26 = sphi 0, %s33
      %s27 = sphi 0, %s25
      %s28 = sphi 0, %s26
      %s29 = sphi 0, %s27
      %s30 = sphi 0, %s28
      %s40 = sphi 0, %s42
      %s43 = sphi 0, %s40
      %s44 = sphi 0, %s43
      %s60 = sphi 0, %s44
      %s66 = sphi 0, %s68
      %s69 = sphi 0, %s66
      %s70 = sphi 0, %s69
      %s86 = sphi 0, %s70
      %s92 = sphi 0, %s94
      %s95 = sphi 0, %s92
      %s96 = sphi 0, %s95
      %s112 = sphi 0, %s96
      %s118 = sphi 0, %s120
      %s121 = sphi 0, %s118
      %s122 = sphi 0, %s121
      %s138 = sphi 0, %s122
      %s142 = sphi 0, %s142
      %s144 = sphi 0, %s142
      %s145 = sphi 0, %s144
      %s159 = sphi 0, %s145
      %s165 = sphi 0, %s167
      %s168 = sphi 0, %s165
      %s169 = sphi 0, %s168
      %s185 = sphi 0, %s169
    $region4: #{tpu_custom_call.1} parent=1 // loop_header_branch
      %21 = sbr.rel (%p19) target = $region8
    $region5: #{tpu_custom_call.1} parent=1 // loop_body
      %s23 = ssub.s32 %s18, 1
      %s24 = ssub.s32 %s18, 2
      %s31 = sadd.s32 1, %s26
      %p32 = scmp.ge.s32.totalorder %s31, 1
      %s33 = scalar_select %p32, 0, %s31
      %s34 = sadd.s32 1, %s25
      %s35 = scalar_select %p32, %s34, %s25
      %p36 = scmp.ge.s32.totalorder %s35, 2
      %s37 = scalar_select %p36, 0, %s35
      %s38 = ssub.s32 %s25, %s37
      %p39 = scmp.eq.s32.totalorder %s38, 0
      %s41 = sadd.s32 %s40, 1
      %s42 = scalar_select %p39, %s40, %s41
      %p45 = pneg %p39
      %p46 = scmp.eq.s32.totalorder %s18, 1
      %p47 = por %p45, %p46
      %p48 = scmp.ne.s32.totalorder %s40, %s43
      %p49 = scmp.eq.s32.totalorder %s18, 0
      %p50 = por %p48, %p49
      %p51 = scmp.ne.s32.totalorder %s40, %s43
      %p52 = scmp.eq.s32.totalorder %s23, 1
      %p53 = por %p51, %p52
      %p54 = scmp.ne.s32.totalorder %s43, %s44
      %p55 = scmp.eq.s32.totalorder %s23, 0
      %p56 = por %p54, %p55
      %p57 = scmp.ne.s32.totalorder %s43, %s44
      %p58 = scmp.eq.s32.totalorder %s24, 1
      %p59 = por %p57, %p58
      %p61 = scmp.ne.s32.totalorder %s44, %s60
      %p62 = scmp.eq.s32.totalorder %s24, 0
      %p63 = por %p61, %p62
      %s64 = ssub.s32 %s26, %s33
      %p65 = scmp.eq.s32.totalorder %s64, 0
      %s67 = sadd.s32 %s66, 1
      %s68 = scalar_select %p65, %s66, %s67
      %p71 = pneg %p65
      %p72 = scmp.eq.s32.totalorder %s18, 1
      %p73 = por %p71, %p72
      %p74 = scmp.ne.s32.totalorder %s66, %s69
      %p75 = scmp.eq.s32.totalorder %s18, 0
      %p76 = por %p74, %p75
      %p77 = scmp.ne.s32.totalorder %s66, %s69
      %p78 = scmp.eq.s32.totalorder %s23, 1
      %p79 = por %p77, %p78
      %p80 = scmp.ne.s32.totalorder %s69, %s70
      %p81 = scmp.eq.s32.totalorder %s23, 0
      %p82 = por %p80, %p81
      %p83 = scmp.ne.s32.totalorder %s69, %s70
      %p84 = scmp.eq.s32.totalorder %s24, 1
      %p85 = por %p83, %p84
      %p87 = scmp.ne.s32.totalorder %s70, %s86
      %p88 = scmp.eq.s32.totalorder %s24, 0
      %p89 = por %p87, %p88
      %s90 = ssub.s32 %s26, %s33
      %p91 = scmp.eq.s32.totalorder %s90, 0
      %s93 = sadd.s32 %s92, 1
      %s94 = scalar_select %p91, %s92, %s93
      %p97 = pneg %p91
      %p98 = scmp.eq.s32.totalorder %s18, 1
      %p99 = por %p97, %p98
      %p100 = scmp.ne.s32.totalorder %s92, %s95
      %p101 = scmp.eq.s32.totalorder %s18, 0
      %p102 = por %p100, %p101
      %p103 = scmp.ne.s32.totalorder %s92, %s95
      %p104 = scmp.eq.s32.totalorder %s23, 1
      %p105 = por %p103, %p104
      %p106 = scmp.ne.s32.totalorder %s95, %s96
      %p107 = scmp.eq.s32.totalorder %s23, 0
      %p108 = por %p106, %p107
      %p109 = scmp.ne.s32.totalorder %s95, %s96
      %p110 = scmp.eq.s32.totalorder %s24, 1
      %p111 = por %p109, %p110
      %p113 = scmp.ne.s32.totalorder %s96, %s112
      %p114 = scmp.eq.s32.totalorder %s24, 0
      %p115 = por %p113, %p114
      %s116 = ssub.s32 %s26, %s33
      %p117 = scmp.eq.s32.totalorder %s116, 0
      %s119 = sadd.s32 %s118, 1
      %s120 = scalar_select %p117, %s118, %s119
      %p123 = pneg %p117
      %p124 = scmp.eq.s32.totalorder %s18, 1
      %p125 = por %p123, %p124
      %p126 = scmp.ne.s32.totalorder %s118, %s121
      %p127 = scmp.eq.s32.totalorder %s18, 0
      %p128 = por %p126, %p127
      %p129 = scmp.ne.s32.totalorder %s118, %s121
      %p130 = scmp.eq.s32.totalorder %s23, 1
      %p131 = por %p129, %p130
      %p132 = scmp.ne.s32.totalorder %s121, %s122
      %p133 = scmp.eq.s32.totalorder %s23, 0
      %p134 = por %p132, %p133
      %p135 = scmp.ne.s32.totalorder %s121, %s122
      %p136 = scmp.eq.s32.totalorder %s24, 1
      %p137 = por %p135, %p136
      %p139 = scmp.ne.s32.totalorder %s122, %s138
      %p140 = scmp.eq.s32.totalorder %s24, 0
      %p141 = por %p139, %p140
      %s143 = sadd.s32 %s142, 1
      %p146 = scmp.eq.s32.totalorder %s18, 1
      %p147 = scmp.ne.s32.totalorder %s142, %s144
      %p148 = scmp.eq.s32.totalorder %s18, 0
      %p149 = por %p147, %p148
      %p150 = scmp.ne.s32.totalorder %s142, %s144
      %p151 = scmp.eq.s32.totalorder %s23, 1
      %p152 = por %p150, %p151
      %p153 = scmp.ne.s32.totalorder %s144, %s145
      %p154 = scmp.eq.s32.totalorder %s23, 0
      %p155 = por %p153, %p154
      %p156 = scmp.ne.s32.totalorder %s144, %s145
      %p157 = scmp.eq.s32.totalorder %s24, 1
      %p158 = por %p156, %p157
      %p160 = scmp.ne.s32.totalorder %s145, %s159
      %p161 = scmp.eq.s32.totalorder %s24, 0
      %p162 = por %p160, %p161
      %s163 = ssub.s32 %s25, %s37
      %p164 = scmp.eq.s32.totalorder %s163, 0
      %s166 = sadd.s32 %s165, 1
      %s167 = scalar_select %p164, %s165, %s166
      %p170 = pneg %p164
      %p171 = scmp.eq.s32.totalorder %s18, 1
      %p172 = por %p170, %p171
      %p173 = scmp.ne.s32.totalorder %s165, %s168
      %p174 = scmp.eq.s32.totalorder %s18, 0
      %p175 = por %p173, %p174
      %p176 = scmp.ne.s32.totalorder %s165, %s168
      %p177 = scmp.eq.s32.totalorder %s23, 1
      %p178 = por %p176, %p177
      %p179 = scmp.ne.s32.totalorder %s168, %s169
      %p180 = scmp.eq.s32.totalorder %s23, 0
      %p181 = por %p179, %p180
      %p182 = scmp.ne.s32.totalorder %s168, %s169
      %p183 = scmp.eq.s32.totalorder %s24, 1
      %p184 = por %p182, %p183
      %p186 = scmp.ne.s32.totalorder %s169, %s185
      %p187 = scmp.eq.s32.totalorder %s24, 0
      %p188 = por %p186, %p187
      %p189 = scmp.le.s32.totalorder 1, %s18
      %p190 = scmp.lt.s32.totalorder %s18, 3
      %p191 = pnand %p189, %p190
      %p192 = pneg %p191
      // Predicated region
      $region9: #{tpu_custom_call.1} parent=5 // pred_check
        _
      $region10: #{tpu_custom_call.1} parent=5 // pred_check_branch
        %194 = sbr.rel (%p191) target = $region12
      $region11: #{tpu_custom_call.1} parent=5 // pred_region
        %s195 = ssub.s32 %s18, 1
        // Predicated region
        $region13: #{tpu_custom_call.1} parent=11 // pred_check
          %p196 = pneg %p82
        $region14: #{tpu_custom_call.1} parent=11 // pred_check_branch
          %198 = sbr.rel (%p196) target = $region16
        $region15: #{tpu_custom_call.1} parent=11 // pred_region
          %s200 = ssub.s32 1024, 1024
          %201 = vsyncadd [#allocation7], %s200
          %s202 = smul.addr %s28, 64
          %s203 = scalar_lea.hbm %s1, %s202
          %s204 = sshll.u32 [#allocation6], 4
          %s205 = int_to_ptr.vmem [resolvable:$true] %s204
          %210 = dma.hbm_to_vmem [thread:$0]  %s203, 1024, %s205, [#allocation7], 64, 64, 4
        $region16: #{tpu_custom_call.1} parent=11 // pred_fallthru
          _
        // Predicated region
        $region17: #{tpu_custom_call.1} parent=11 // pred_check
          %p211 = pneg %p108
        $region18: #{tpu_custom_call.1} parent=11 // pred_check_branch
          %213 = sbr.rel (%p211) target = $region20
        $region19: #{tpu_custom_call.1} parent=11 // pred_region
          %p214 = scmp.lt.s32.totalorder %s28, 0
          %s215 = scalar_select %p214, %s28, 0
          %s216 = scalar_lea.vmem %s2, %s215
        $region20: #{tpu_custom_call.1} parent=11 // pred_fallthru
          _
        // Predicated region
        $region21: #{tpu_custom_call.1} parent=11 // pred_check
          %p217 = pneg %p134
        $region22: #{tpu_custom_call.1} parent=11 // pred_check_branch
          %219 = sbr.rel (%p217) target = $region24
        $region23: #{tpu_custom_call.1} parent=11 // pred_region
          %s220 = smul.u32 16, %s28
          %s222 = ssub.s32 1024, 1024
          %223 = vsyncadd [#allocation7], %s222
          %s224 = smul.addr %s220, 64
          %s225 = scalar_lea.hbm %s3, %s224
          %s226 = sshll.u32 [#allocation8], 4
          %s227 = int_to_ptr.vmem [resolvable:$true] %s226
          %232 = dma.hbm_to_vmem [thread:$0]  %s225, 1024, %s227, [#allocation7], 64, 64, 4
        $region24: #{tpu_custom_call.1} parent=11 // pred_fallthru
          _
        // Predicated region
        $region25: #{tpu_custom_call.1} parent=11 // pred_check
          %p233 = pneg %p155
        $region26: #{tpu_custom_call.1} parent=11 // pred_check_branch
          %235 = sbr.rel (%p233) target = $region28
        $region27: #{tpu_custom_call.1} parent=11 // pred_region
          _
        $region28: #{tpu_custom_call.1} parent=11 // pred_fallthru
          _
      $region12: #{tpu_custom_call.1} parent=5 // pred_fallthru
        _
      %p236 = scmp.lt.s32.totalorder %s18, 2
      // Predicated region
      $region29: #{tpu_custom_call.1} parent=5 // pred_check
        %p237 = pneg %p236
      $region30: #{tpu_custom_call.1} parent=5 // pred_check_branch
        %239 = sbr.rel (%p237) target = $region32
      $region31: #{tpu_custom_call.1} parent=5 // pred_region
        // Predicated region
        $region33: #{tpu_custom_call.1} parent=31 // pred_check
          %p240 = pneg %p50
        $region34: #{tpu_custom_call.1} parent=31 // pred_check_branch
          %242 = sbr.rel (%p240) target = $region36
        $region35: #{tpu_custom_call.1} parent=31 // pred_region
          %s243 = sand.u32 %s40, 1
          %s244 = scalar_lea.sflag [#allocation4], %s243
          %s245 = sand.u32 %s40, 1
          %s246 = smul.addr %s245, 4
          %s247 = scalar_lea.vmem [#allocation3], %s246
          %s249 = ssub.s32 64, 64
          %250 = vsyncadd %s244, %s249
          %s251 = smul.addr %s25, 64
          %s252 = scalar_lea.hbm %s0, %s251
          %s254 = sshll.u32 %s247, 4
          %s255 = int_to_ptr.vmem [resolvable:$true] %s254
          %257 = dma.hbm_to_vmem [thread:$0]  %s252, 64, %s255, %s244
        $region36: #{tpu_custom_call.1} parent=31 // pred_fallthru
          _
      $region32: #{tpu_custom_call.1} parent=5 // pred_fallthru
        _
      %p258 = scmp.le.s32.totalorder 1, %s18
      %p259 = scmp.lt.s32.totalorder %s18, 3
      %p260 = pnand %p258, %p259
      %p261 = pneg %p260
      // Predicated region
      $region37: #{tpu_custom_call.1} parent=5 // pred_check
        _
      $region38: #{tpu_custom_call.1} parent=5 // pred_check_branch
        %263 = sbr.rel (%p260) target = $region40
      $region39: #{tpu_custom_call.1} parent=5 // pred_region
        %s264 = ssub.s32 %s18, 1
        %s265 = sand.u32 %s43, 1
        %s266 = scalar_lea.sflag [#allocation4], %s265
        %s267 = sand.u32 %s43, 1
        %s268 = smul.addr %s267, 4
        %s269 = scalar_lea.vmem [#allocation3], %s268
        // Predicated region
        $region41: #{tpu_custom_call.1} parent=39 // pred_check
          %p270 = pneg %p56
        $region42: #{tpu_custom_call.1} parent=39 // pred_check_branch
          %272 = sbr.rel (%p270) target = $region44
        $region43: #{tpu_custom_call.1} parent=39 // pred_region
          %273 = dma.done %s266, 64
        $region44: #{tpu_custom_call.1} parent=39 // pred_fallthru
          _
        // Predicated region
        $region45: #{tpu_custom_call.1} parent=39 // pred_check
          %p274 = pneg %p82
        $region46: #{tpu_custom_call.1} parent=39 // pred_check_branch
          %276 = sbr.rel (%p274) target = $region48
        $region47: #{tpu_custom_call.1} parent=39 // pred_region
          %277 = dma.done [#allocation7], 1024
        $region48: #{tpu_custom_call.1} parent=39 // pred_fallthru
          _
        // Predicated region
        $region49: #{tpu_custom_call.1} parent=39 // pred_check
          %p278 = pneg %p134
        $region50: #{tpu_custom_call.1} parent=39 // pred_check_branch
          %280 = sbr.rel (%p278) target = $region52
        $region51: #{tpu_custom_call.1} parent=39 // pred_region
          %281 = dma.done [#allocation7], 1024
        $region52: #{tpu_custom_call.1} parent=39 // pred_fallthru
          _
        %s282 = sand.u32 %s43, 1
        %s283 = scalar_lea.sflag [#allocation4], %s282
        %s284 = sand.u32 %s43, 1
        %s285 = smul.addr %s284, 4
        %s286 = scalar_lea.vmem [#allocation3], %s285
        %p287 = pneg %p56
        %p288 = pneg %p53
        %p289 = pneg %p82
        %p290 = pneg %p79
        %p291 = scmp.lt.s32.totalorder %s28, 0
        %s292 = scalar_select %p291, %s28, 0
        %s293 = scalar_lea.vmem %s2, %s292
        %p294 = pneg %p108
        %p295 = pneg %p105
        %p296 = pneg %p134
        %p297 = pneg %p131
        %p298 = pneg %p155
        %p299 = pneg %p152
        %p300 = pneg %p181
        %p301 = pneg %p178
        %s302 = sand.u32 %s168, 1
        %s303 = scalar_lea.sflag [#allocation5], %s302
        %s304 = sand.u32 %s168, 1
        %s305 = smul.addr %s304, 8
        %s306 = scalar_lea.vmem [#allocation9], %s305
        %p307 = scmp.lt.s32.totalorder %s28, 0
        %s308 = scalar_select %p307, %s28, 0
        %s309 = scalar_lea.vmem %s2, %s308
        %s310 = smul.u32 16, %s28
        %p312 = scmp.eq.s32.totalorder %s28, 0
        // Predicated region
        $region53: #{tpu_custom_call.1} parent=39 // pred_check
          %p313 = pneg %p312
        $region54: #{tpu_custom_call.1} parent=39 // pred_check_branch
          %315 = sbr.rel (%p313) target = $region56
        $region55: #{tpu_custom_call.1} parent=39 // pred_region
          %316 = vst [vmem:[#allocation2] sm:$0xff] 0.0
        $region56: #{tpu_custom_call.1} parent=39 // pred_fallthru
          _
        %v317 = vld [vmem:[%s269] sm:$0xf]
        %v318 = vld [vmem:[#allocation6] sm:$0xf]
        %v319 = vld [vmem:[#allocation6 + $0x4] sm:$0xf]
        %v320 = vld [vmem:[#allocation6 + $0x8] sm:$0xf]
        %v321 = vld [vmem:[#allocation6 + $0xc] sm:$0xf]
        %v322 = vld [vmem:[#allocation6 + $0x10] sm:$0xf]
        %v323 = vld [vmem:[#allocation6 + $0x14] sm:$0xf]
        %v324 = vld [vmem:[#allocation6 + $0x18] sm:$0xf]
        %v325 = vld [vmem:[#allocation6 + $0x1c] sm:$0xf]
        %v326 = vld [vmem:[#allocation6 + $0x20] sm:$0xf]
        %v327 = vld [vmem:[#allocation6 + $0x24] sm:$0xf]
        %v328 = vld [vmem:[#allocation6 + $0x28] sm:$0xf]
        %v329 = vld [vmem:[#allocation6 + $0x2c] sm:$0xf]
        %v330 = vld [vmem:[#allocation6 + $0x30] sm:$0xf]
        %v331 = vld [vmem:[#allocation6 + $0x34] sm:$0xf]
        %v332 = vld [vmem:[#allocation6 + $0x38] sm:$0xf]
        %v333 = vld [vmem:[#allocation6 + $0x3c] sm:$0xf]
        %v334 = vld [vmem:[%s309] sm:$0x1]
        %v336 = vlaneseq
        %v337 = vshrl.u32 %v336, 7
        %v338 = vsub.s32 0, %v337
        %v339 = vrot.slane %v334, %v338
        %v357 = vunpack.c.l.b16 %v318
        %v358 = vunpack.c.l.b16 %v319
        %v359 = vunpack.c.l.b16 %v320
        %v360 = vunpack.c.l.b16 %v321
        %v361 = vunpack.c.l.b16 %v322
        %v362 = vunpack.c.l.b16 %v323
        %v363 = vunpack.c.l.b16 %v324
        %v364 = vunpack.c.l.b16 %v325
        %v365 = vunpack.c.l.b16 %v326
        %v366 = vunpack.c.l.b16 %v327
        %v367 = vunpack.c.l.b16 %v328
        %v368 = vunpack.c.l.b16 %v329
        %v369 = vunpack.c.l.b16 %v330
        %v370 = vunpack.c.l.b16 %v331
        %v371 = vunpack.c.l.b16 %v332
        %v372 = vunpack.c.l.b16 %v333
        %v373 = vpack.c.b16 %v358, %v357
        %v374 = vpack.c.b16 %v360, %v359
        %v375 = vpack.c.b16 %v362, %v361
        %v376 = vpack.c.b16 %v364, %v363
        %v377 = vpack.c.b16 %v366, %v365
        %v378 = vpack.c.b16 %v368, %v367
        %v379 = vpack.c.b16 %v370, %v369
        %v380 = vpack.c.b16 %v372, %v371
        %389 = vmatprep.subr.bf16.mxu0 0
        %390 = vmatpush1.bf16.msra.mxu0 %v373
        %391 = vmatprep.subr.bf16.mxu0 0
        %392 = vmatpush1.bf16.msra.mxu0 %v374
        %393 = vmatprep.subr.bf16.mxu0 0
        %394 = vmatpush1.bf16.msra.mxu0 %v375
        %395 = vmatprep.subr.bf16.mxu0 0
        %396 = vmatpush1.bf16.msra.mxu0 %v376
        %397 = vmatprep.subr.bf16.mxu0 0
        %398 = vmatpush1.bf16.msra.mxu0 %v377
        %399 = vmatprep.subr.bf16.mxu0 0
        %400 = vmatpush1.bf16.msra.mxu0 %v378
        %401 = vmatprep.subr.bf16.mxu0 0
        %402 = vmatpush1.bf16.msra.mxu0 %v379
        %403 = vmatprep.subr.bf16.mxu0 0
        %404 = vmatpush1.bf16.msra.mxu0 %v380
        %405 = vmatprep.subr.bf16.mxu0 0
        %406 = vmatpush1.bf16.msra.mxu0 0
        %407 = vmatprep.subr.bf16.mxu0 0
        %408 = vmatpush1.bf16.msra.mxu0 0
        %409 = vmatprep.subr.bf16.mxu0 0
        %410 = vmatpush1.bf16.msra.mxu0 0
        %411 = vmatprep.subr.bf16.mxu0 0
        %412 = vmatpush1.bf16.msra.mxu0 0
        %413 = vmatprep.subr.bf16.mxu0 0
        %414 = vmatpush1.bf16.msra.mxu0 0
        %415 = vmatprep.subr.bf16.mxu0 0
        %416 = vmatpush1.bf16.msra.mxu0 0
        %417 = vmatprep.subr.bf16.mxu0 0
        %418 = vmatpush1.bf16.msra.mxu0 0
        %419 = vmatprep.subr.bf16.mxu0 0
        %420 = vmatpush1.bf16.msra.mxu0 0
        %421 = vmatprep.mubr.bf16.mxu0 0
        %422 = vmatmul.mubr.bf16.gmra.mrb[0].mxu0 %v317
        %v423 = vpop.f32.mrb[0].mxu0
        %v424 = vadd.f32 %v339, %v423
        %v425 = vpop.f32.mrb[0].mxu0
        %v426 = vpop.f32.mrb[0].mxu0
        %v427 = vpop.f32.mrb[0].mxu0
        %428 = vdwg.mxu0
        %v429 = vmax.f32 %v424, 0.0
        %v430 = vld [vmem:[#allocation2] sm:$0xff]
        %v431 = vpack.c.bf16 %v429, %v429
        %v432 = vld [vmem:[#allocation8] sm:$0xf]
        %v433 = vld [vmem:[#allocation8 + $0x4] sm:$0xf]
        %v434 = vld [vmem:[#allocation8 + $0x8] sm:$0xf]
        %v435 = vld [vmem:[#allocation8 + $0xc] sm:$0xf]
        %v436 = vld [vmem:[#allocation8 + $0x10] sm:$0xf]
        %v437 = vld [vmem:[#allocation8 + $0x14] sm:$0xf]
        %v438 = vld [vmem:[#allocation8 + $0x18] sm:$0xf]
        %v439 = vld [vmem:[#allocation8 + $0x1c] sm:$0xf]
        %v440 = vld [vmem:[#allocation8 + $0x20] sm:$0xf]
        %v441 = vld [vmem:[#allocation8 + $0x24] sm:$0xf]
        %v442 = vld [vmem:[#allocation8 + $0x28] sm:$0xf]
        %v443 = vld [vmem:[#allocation8 + $0x2c] sm:$0xf]
        %v444 = vld [vmem:[#allocation8 + $0x30] sm:$0xf]
        %v445 = vld [vmem:[#allocation8 + $0x34] sm:$0xf]
        %v446 = vld [vmem:[#allocation8 + $0x38] sm:$0xf]
        %v447 = vld [vmem:[#allocation8 + $0x3c] sm:$0xf]
        %v464 = vunpack.c.l.b16 %v432
        %v465 = vunpack.c.l.b16 %v433
        %v466 = vunpack.c.l.b16 %v434
        %v467 = vunpack.c.l.b16 %v435
        %v468 = vunpack.c.l.b16 %v436
        %v469 = vunpack.c.l.b16 %v437
        %v470 = vunpack.c.l.b16 %v438
        %v471 = vunpack.c.l.b16 %v439
        %v472 = vunpack.c.l.b16 %v440
        %v473 = vunpack.c.l.b16 %v441
        %v474 = vunpack.c.l.b16 %v442
        %v475 = vunpack.c.l.b16 %v443
        %v476 = vunpack.c.l.b16 %v444
        %v477 = vunpack.c.l.b16 %v445
        %v478 = vunpack.c.l.b16 %v446
        %v479 = vunpack.c.l.b16 %v447
        %v480 = vpack.c.b16 %v465, %v464
        %v481 = vpack.c.b16 %v467, %v466
        %v482 = vpack.c.b16 %v469, %v468
        %v483 = vpack.c.b16 %v471, %v470
        %v484 = vpack.c.b16 %v473, %v472
        %v485 = vpack.c.b16 %v475, %v474
        %v486 = vpack.c.b16 %v477, %v476
        %v487 = vpack.c.b16 %v479, %v478
        %496 = vmatprep.subr.bf16.mxu0 0
        %497 = vmatpush1.bf16.msra.mxu0 %v480
        %498 = vmatprep.subr.bf16.mxu0 0
        %499 = vmatpush1.bf16.msra.mxu0 %v481
        %500 = vmatprep.subr.bf16.mxu0 0
        %501 = vmatpush1.bf16.msra.mxu0 %v482
        %502 = vmatprep.subr.bf16.mxu0 0
        %503 = vmatpush1.bf16.msra.mxu0 %v483
        %504 = vmatprep.subr.bf16.mxu0 0
        %505 = vmatpush1.bf16.msra.mxu0 %v484
        %506 = vmatprep.subr.bf16.mxu0 0
        %507 = vmatpush1.bf16.msra.mxu0 %v485
        %508 = vmatprep.subr.bf16.mxu0 0
        %509 = vmatpush1.bf16.msra.mxu0 %v486
        %510 = vmatprep.subr.bf16.mxu0 0
        %511 = vmatpush1.bf16.msra.mxu0 %v487
        %512 = vmatprep.subr.bf16.mxu0 0
        %513 = vmatpush1.bf16.msra.mxu0 0
        %514 = vmatprep.subr.bf16.mxu0 0
        %515 = vmatpush1.bf16.msra.mxu0 0
        %516 = vmatprep.subr.bf16.mxu0 0
        %517 = vmatpush1.bf16.msra.mxu0 0
        %518 = vmatprep.subr.bf16.mxu0 0
        %519 = vmatpush1.bf16.msra.mxu0 0
        %520 = vmatprep.subr.bf16.mxu0 0
        %521 = vmatpush1.bf16.msra.mxu0 0
        %522 = vmatprep.subr.bf16.mxu0 0
        %523 = vmatpush1.bf16.msra.mxu0 0
        %524 = vmatprep.subr.bf16.mxu0 0
        %525 = vmatpush1.bf16.msra.mxu0 0
        %526 = vmatprep.subr.bf16.mxu0 0
        %527 = vmatpush1.bf16.msra.mxu0 0
        %528 = vmatprep.mubr.bf16.mxu0 0
        %529 = vmatmul.mubr.bf16.gmra.mrb[0].mxu0 %v431
        %v530 = vpop.f32.mrb[0].mxu0
        %v531 = vadd.f32 0.0, %v530
        %v532 = vpop.f32.mrb[0].mxu0
        %v533 = vpop.f32.mrb[0].mxu0
        %v534 = vpop.f32.mrb[0].mxu0
        %535 = vdwg.mxu0
        %v536 = vadd.f32 %v430, %v531
        %537 = vst [vmem:[#allocation2] sm:$0xff] %v536
        // Predicated region
        $region57: #{tpu_custom_call.1} parent=39 // pred_check
          %p538 = pneg %p312
        $region58: #{tpu_custom_call.1} parent=39 // pred_check_branch
          %540 = sbr.rel (%p538) target = $region60
        $region59: #{tpu_custom_call.1} parent=39 // pred_region
          %v541 = vld [vmem:[#allocation2] sm:$0xff]
          %v542 = vld [vmem:[%s4] sm:$0x1]
          %v544 = vlaneseq
          %v545 = vshrl.u32 %v544, 7
          %v546 = vsub.s32 0, %v545
          %v547 = vrot.slane %v542, %v546
          %v549 = vadd.f32 %v541, %v547
          %550 = vst [vmem:[%s306] sm:$0xff] %v549
        $region60: #{tpu_custom_call.1} parent=39 // pred_fallthru
          _
        %s551 = sand.u32 %s168, 1
        %s552 = scalar_lea.sflag [#allocation5], %s551
        %s553 = sand.u32 %s168, 1
        %s554 = smul.addr %s553, 8
        %s555 = scalar_lea.vmem [#allocation9], %s554
        // Predicated region
        $region61: #{tpu_custom_call.1} parent=39 // pred_check
          %p556 = pneg %p178
        $region62: #{tpu_custom_call.1} parent=39 // pred_check_branch
          %558 = sbr.rel (%p556) target = $region64
        $region63: #{tpu_custom_call.1} parent=39 // pred_region
          %s560 = ssub.s32 128, 128
          %561 = vsyncadd %s552, %s560
          %s562 = smul.addr %s27, 128
          %s563 = scalar_lea.hbm %s5, %s562
          %s565 = sshll.u32 %s555, 4
          %s566 = int_to_ptr.vmem [resolvable:$true] %s565
          %568 = dma.vmem_to_hbm [thread:$0]  %s566, 128, %s563, %s552
        $region64: #{tpu_custom_call.1} parent=39 // pred_fallthru
          _
      $region40: #{tpu_custom_call.1} parent=5 // pred_fallthru
        _
      %p569 = scmp.le.s32.totalorder 2, %s18
      // Predicated region
      $region65: #{tpu_custom_call.1} parent=5 // pred_check
        %p570 = pneg %p569
      $region66: #{tpu_custom_call.1} parent=5 // pred_check_branch
        %572 = sbr.rel (%p570) target = $region68
      $region67: #{tpu_custom_call.1} parent=5 // pred_region
        %s573 = ssub.s32 %s18, 2
        // Predicated region
        $region69: #{tpu_custom_call.1} parent=67 // pred_check
          %p574 = pneg %p184
        $region70: #{tpu_custom_call.1} parent=67 // pred_check_branch
          %576 = sbr.rel (%p574) target = $region72
        $region71: #{tpu_custom_call.1} parent=67 // pred_region
          %s577 = sand.u32 %s169, 1
          %s578 = scalar_lea.sflag [#allocation5], %s577
          %s579 = sand.u32 %s169, 1
          %s580 = smul.addr %s579, 8
          %s581 = scalar_lea.vmem [#allocation9], %s580
          %582 = dma.done %s578, 128
        $region72: #{tpu_custom_call.1} parent=67 // pred_fallthru
          _
      $region68: #{tpu_custom_call.1} parent=5 // pred_fallthru
        _
    $region6: #{tpu_custom_call.1} parent=1 // loop_footer
      %s22 = sadd.s32 1, %s18
    $region7: #{tpu_custom_call.1} parent=1 // loop_footer_branch
      %17 = sbr.rel target = $region3
    $region8: #{tpu_custom_call.1} parent=1 // loop_exit
      _
    %583 = vsyncpa [#allocation4], 1
    %s584 = scalar_lea.sflag [#allocation4], 1
    %585 = vsyncpa %s584, 1
    %586 = vsyncpa [#allocation7], 1
    %587 = vsyncpa [#allocation5], 1
    %s588 = scalar_lea.sflag [#allocation5], 1
    %589 = vsyncpa %s588, 1

</llo_original>
